<compile_context>
chip_gen: v5e
topology: v5e:2x2
jax: 0.10.0
libtpu: 0.0.40
codegen_flags: <defaults>
</compile_context>

<pallas_src>
import jax
import jax.numpy as jnp
from jax import lax
from jax.experimental import pallas as pl
from jax.experimental.pallas import tpu as pltpu

INPUT_SIZE = 32
HIDDEN_SIZE = 32
MAXITER = 100
ATOL = 1e-8
RTOL = 1e-5
CHECK_EVERY = 10   # unrolled f-steps per convergence check; divides MAXITER


def _deq_kernel(x_ref, wih_ref, whh_ref, bias_ref, z_ref):
    """Full DEQ forward (fixed-point iteration + one extra f-eval) in VMEM."""
    x = x_ref[...]          # (1, D_in)
    w_ih = wih_ref[...]     # (D_in, H)
    w_hh = whh_ref[...]     # (H, H)
    bias = bias_ref[...]    # (1, H)  == b_ih + b_hh (folded on host)

    # x-dependent part is constant across iterations -> hoist out of the loop.
    xw = jnp.dot(x, w_ih, preferred_element_type=jnp.float32) + bias  # (1, H)

    def f(z):
        return jnp.tanh(xw + jnp.dot(z, w_hh, preferred_element_type=jnp.float32))

    z0 = jnp.zeros_like(xw)

    # Genuine early-exit loop.  Each body does CHECK_EVERY f-steps (Python
    # unrolled, no convergence math on their critical path), then one sqrt-free
    # convergence check on the last consecutive pair:
    #     ||z_new - z||^2 <= RTOL^2 * ||z||^2 + ATOL^2
    # which is a strictly tighter threshold than the reference's
    # (RTOL*||z|| + ATOL)^2, so this never stops earlier than PyTorch; it may
    # run up to CHECK_EVERY-1 extra contraction steps past the exact break.
    def cond(carry):
        it, _, diff_sq, thresh_sq = carry
        return jnp.logical_and(diff_sq > thresh_sq, it < MAXITER)

    def body(carry):
        it, z, _, _ = carry
        for _ in range(CHECK_EVERY - 1):   # Python-unrolled, check-free steps
            z = f(z)
        z_prev = z
        z_new = f(z_prev)
        d = z_new - z_prev
        diff_sq = jnp.sum(d * d)
        thresh_sq = (RTOL * RTOL) * jnp.sum(z_prev * z_prev) + (ATOL * ATOL)
        return (it + CHECK_EVERY, z_new, diff_sq, thresh_sq)

    init = (jnp.zeros((), jnp.int32), z0,
            jnp.ones((), jnp.float32), jnp.zeros((), jnp.float32))
    _, z_star, _, _ = lax.while_loop(cond, body, init)

    # forward() applies f once more outside no_grad; output = f(x, z*).
    z_ref[...] = f(z_star)


def prepare_params(w_ih, w_hh, b_ih, b_hh):
    """One-time host-side parameter prep: transpose, cast, fold the biases.

    w_ih: (H, D_in), w_hh: (H, H), b_ih/b_hh: (H,)  (PyTorch RNNCell layout).
    Returns (w_ih^T, w_hh^T, (b_ih+b_hh) as a (1, H) row), all float32.
    """
    h = w_ih.shape[0]
    wih_t = jnp.asarray(w_ih, jnp.float32).T            # (D_in, H)
    whh_t = jnp.asarray(w_hh, jnp.float32).T            # (H, H)
    bias = (jnp.asarray(b_ih, jnp.float32)
            + jnp.asarray(b_hh, jnp.float32)).reshape(1, h)
    return wih_t, whh_t, bias


@jax.jit
def deq_fixed_point(x, wih_t, whh_t, bias2d):
    """x: (D_in,) ; wih_t: (D_in, H) ; whh_t: (H, H) ; bias2d: (1, H)."""
    d_in = x.shape[0]
    h = whh_t.shape[0]
    x2d = x.reshape(1, d_in).astype(jnp.float32)

    cost = pl.CostEstimate(
        flops=MAXITER * 2 * h * h + 2 * d_in * h,
        transcendentals=MAXITER * h,
        bytes_accessed=4 * (d_in + d_in * h + h * h + h + h),
    )

    # TODO(synk): if a batch of x vectors is ever processed, add a leading
    # batch grid axis with dimension_semantics=("parallel",) so v7x's second
    # TensorCore is used; a single serial fixed-point chain occupies one TC.
    z = pl.pallas_call(
        _deq_kernel,
        out_shape=jax.ShapeDtypeStruct((1, h), jnp.float32),
        in_specs=[pl.BlockSpec(memory_space=pltpu.MemorySpace.VMEM)] * 4,
        out_specs=pl.BlockSpec(memory_space=pltpu.MemorySpace.VMEM),
        cost_estimate=cost,
    )(x2d, wih_t, whh_t, bias2d)
    return z.reshape(h)


def _reference_deq(x, w_ih, w_hh, b_ih, b_hh):
    """Pure-JAX eager reference mirroring the PyTorch forward (with break)."""
    def f(x_, z_):
        return jnp.tanh(x_ @ w_ih.T + b_ih + z_ @ w_hh.T + b_hh)

    z = jnp.zeros((HIDDEN_SIZE,), jnp.float32)
    for _ in range(MAXITER):
        z_new = f(x, z)
        converged = float(jnp.linalg.norm(z_new - z)) <= (
            RTOL * float(jnp.linalg.norm(z)) + ATOL)
        z = z_new
        if converged:
            break
    return f(x, z)


if __name__ == "__main__":
    key = jax.random.PRNGKey(0)
    kx, k1, k2, k3, k4 = jax.random.split(key, 5)

    k = 1.0 / jnp.sqrt(HIDDEN_SIZE)
    x = jax.random.normal(kx, (INPUT_SIZE,), dtype=jnp.float32)
    w_ih = jax.random.uniform(k1, (HIDDEN_SIZE, INPUT_SIZE), jnp.float32, -k, k)
    # scale recurrent weight so the tanh map is a contraction (deterministic init).
    w_hh = 0.5 * jax.random.uniform(k2, (HIDDEN_SIZE, HIDDEN_SIZE), jnp.float32, -k, k)
    b_ih = jax.random.uniform(k3, (HIDDEN_SIZE,), jnp.float32, -k, k)
    b_hh = jax.random.uniform(k4, (HIDDEN_SIZE,), jnp.float32, -k, k)

    # One-time parameter prep (transpose / cast / bias fold) outside the jit.
    wih_t, whh_t, bias2d = prepare_params(w_ih, w_hh, b_ih, b_hh)

    z_kernel = deq_fixed_point(x, wih_t, whh_t, bias2d)
    jax.block_until_ready(z_kernel)

    z_ref = _reference_deq(x, w_ih, w_hh, b_ih, b_hh)
    assert z_kernel.shape == (HIDDEN_SIZE,)
    # Chunked convergence check may run up to CHECK_EVERY-1 extra contraction
    # steps past the exact early-break iterate; with the contraction-scaled
    # w_hh the output difference is bounded by ~rtol*||z|| ~= a few e-5, so
    # compare at that (still tight) tolerance.
    assert jnp.allclose(z_kernel, z_ref, atol=5e-5, rtol=1e-5), (
        "mismatch vs pure-JAX reference")

    # TODO(synk): backward_hook / CGS solve is autograd-only (no effect on the
    # forward pass), so it is not part of the forward kernel.
    print("KERNEL_OK")
</pallas_src>

<mosaic_0001>
module attributes {stable_mosaic.version = 11 : i64} {
  func.func @_deq_kernel(%arg0: memref<1x32xf32, #tpu.memory_space<vmem>>, %arg1: memref<32x32xf32, #tpu.memory_space<vmem>>, %arg2: memref<32x32xf32, #tpu.memory_space<vmem>>, %arg3: memref<1x32xf32, #tpu.memory_space<vmem>>, %arg4: memref<1x32xf32, #tpu.memory_space<vmem>>) attributes {dimension_semantics = [], scalar_prefetch = 0 : i64, scratch_operands = 0 : i64, tpu.core_type = #tpu.core_type<tc>} {
    %c0 = arith.constant 0 : index
    %c0_0 = arith.constant 0 : index
    %0 = vector.load %arg0[%c0, %c0_0] : memref<1x32xf32, #tpu.memory_space<vmem>>, vector<1x32xf32>
    %c0_1 = arith.constant 0 : index
    %c0_2 = arith.constant 0 : index
    %1 = vector.load %arg1[%c0_1, %c0_2] : memref<32x32xf32, #tpu.memory_space<vmem>>, vector<32x32xf32>
    %c0_3 = arith.constant 0 : index
    %c0_4 = arith.constant 0 : index
    %2 = vector.load %arg2[%c0_3, %c0_4] : memref<32x32xf32, #tpu.memory_space<vmem>>, vector<32x32xf32>
    %c0_5 = arith.constant 0 : index
    %c0_6 = arith.constant 0 : index
    %3 = vector.load %arg3[%c0_5, %c0_6] : memref<1x32xf32, #tpu.memory_space<vmem>>, vector<1x32xf32>
    %cst = arith.constant dense<0.000000e+00> : vector<1x32xf32>
    %4 = tpu.matmul %0, %1, %cst {dimension_numbers = #tpu.dot_dimension_numbers<[1], [0], [0], [1], [0, 0, 1, 1], [], []>} : vector<1x32xf32>, vector<32x32xf32>, vector<1x32xf32> -> vector<1x32xf32>
    %5 = arith.addf %4, %3 : vector<1x32xf32>
    %cst_7 = arith.constant 0.000000e+00 : f32
    %6 = vector.broadcast %cst_7 : f32 to vector<1x32xf32>
    %c0_i32 = arith.constant 0 : i32
    %cst_8 = arith.constant 1.000000e+00 : f32
    %cst_9 = arith.constant 0.000000e+00 : f32
    %7:4 = scf.while (%arg5 = %c0_i32, %arg6 = %6, %arg7 = %cst_8, %arg8 = %cst_9) : (i32, vector<1x32xf32>, f32, f32) -> (i32, vector<1x32xf32>, f32, f32) {
      %12 = arith.cmpf ogt, %arg7, %arg8 : f32
      %c100_i32 = arith.constant 100 : i32
      %13 = arith.cmpi slt, %arg5, %c100_i32 : i32
      %14 = arith.andi %12, %13 : i1
      scf.condition(%14) %arg5, %arg6, %arg7, %arg8 : i32, vector<1x32xf32>, f32, f32
    } do {
    ^bb0(%arg5: i32, %arg6: vector<1x32xf32>, %arg7: f32, %arg8: f32):
      %cst_13 = arith.constant dense<0.000000e+00> : vector<1x32xf32>
      %12 = tpu.matmul %arg6, %2, %cst_13 {dimension_numbers = #tpu.dot_dimension_numbers<[1], [0], [0], [1], [0, 0, 1, 1], [], []>} : vector<1x32xf32>, vector<32x32xf32>, vector<1x32xf32> -> vector<1x32xf32>
      %13 = arith.addf %5, %12 : vector<1x32xf32>
      %14 = math.tanh %13 : vector<1x32xf32>
      %cst_14 = arith.constant dense<0.000000e+00> : vector<1x32xf32>
      %15 = tpu.matmul %14, %2, %cst_14 {dimension_numbers = #tpu.dot_dimension_numbers<[1], [0], [0], [1], [0, 0, 1, 1], [], []>} : vector<1x32xf32>, vector<32x32xf32>, vector<1x32xf32> -> vector<1x32xf32>
      %16 = arith.addf %5, %15 : vector<1x32xf32>
      %17 = math.tanh %16 : vector<1x32xf32>
      %cst_15 = arith.constant dense<0.000000e+00> : vector<1x32xf32>
      %18 = tpu.matmul %17, %2, %cst_15 {dimension_numbers = #tpu.dot_dimension_numbers<[1], [0], [0], [1], [0, 0, 1, 1], [], []>} : vector<1x32xf32>, vector<32x32xf32>, vector<1x32xf32> -> vector<1x32xf32>
      %19 = arith.addf %5, %18 : vector<1x32xf32>
      %20 = math.tanh %19 : vector<1x32xf32>
      %cst_16 = arith.constant dense<0.000000e+00> : vector<1x32xf32>
      %21 = tpu.matmul %20, %2, %cst_16 {dimension_numbers = #tpu.dot_dimension_numbers<[1], [0], [0], [1], [0, 0, 1, 1], [], []>} : vector<1x32xf32>, vector<32x32xf32>, vector<1x32xf32> -> vector<1x32xf32>
      %22 = arith.addf %5, %21 : vector<1x32xf32>
      %23 = math.tanh %22 : vector<1x32xf32>
      %cst_17 = arith.constant dense<0.000000e+00> : vector<1x32xf32>
      %24 = tpu.matmul %23, %2, %cst_17 {dimension_numbers = #tpu.dot_dimension_numbers<[1], [0], [0], [1], [0, 0, 1, 1], [], []>} : vector<1x32xf32>, vector<32x32xf32>, vector<1x32xf32> -> vector<1x32xf32>
      %25 = arith.addf %5, %24 : vector<1x32xf32>
      %26 = math.tanh %25 : vector<1x32xf32>
      %cst_18 = arith.constant dense<0.000000e+00> : vector<1x32xf32>
      %27 = tpu.matmul %26, %2, %cst_18 {dimension_numbers = #tpu.dot_dimension_numbers<[1], [0], [0], [1], [0, 0, 1, 1], [], []>} : vector<1x32xf32>, vector<32x32xf32>, vector<1x32xf32> -> vector<1x32xf32>
      %28 = arith.addf %5, %27 : vector<1x32xf32>
      %29 = math.tanh %28 : vector<1x32xf32>
      %cst_19 = arith.constant dense<0.000000e+00> : vector<1x32xf32>
      %30 = tpu.matmul %29, %2, %cst_19 {dimension_numbers = #tpu.dot_dimension_numbers<[1], [0], [0], [1], [0, 0, 1, 1], [], []>} : vector<1x32xf32>, vector<32x32xf32>, vector<1x32xf32> -> vector<1x32xf32>
      %31 = arith.addf %5, %30 : vector<1x32xf32>
      %32 = math.tanh %31 : vector<1x32xf32>
      %cst_20 = arith.constant dense<0.000000e+00> : vector<1x32xf32>
      %33 = tpu.matmul %32, %2, %cst_20 {dimension_numbers = #tpu.dot_dimension_numbers<[1], [0], [0], [1], [0, 0, 1, 1], [], []>} : vector<1x32xf32>, vector<32x32xf32>, vector<1x32xf32> -> vector<1x32xf32>
      %34 = arith.addf %5, %33 : vector<1x32xf32>
      %35 = math.tanh %34 : vector<1x32xf32>
      %cst_21 = arith.constant dense<0.000000e+00> : vector<1x32xf32>
      %36 = tpu.matmul %35, %2, %cst_21 {dimension_numbers = #tpu.dot_dimension_numbers<[1], [0], [0], [1], [0, 0, 1, 1], [], []>} : vector<1x32xf32>, vector<32x32xf32>, vector<1x32xf32> -> vector<1x32xf32>
      %37 = arith.addf %5, %36 : vector<1x32xf32>
      %38 = math.tanh %37 : vector<1x32xf32>
      %cst_22 = arith.constant dense<0.000000e+00> : vector<1x32xf32>
      %39 = tpu.matmul %38, %2, %cst_22 {dimension_numbers = #tpu.dot_dimension_numbers<[1], [0], [0], [1], [0, 0, 1, 1], [], []>} : vector<1x32xf32>, vector<32x32xf32>, vector<1x32xf32> -> vector<1x32xf32>
      %40 = arith.addf %5, %39 : vector<1x32xf32>
      %41 = math.tanh %40 : vector<1x32xf32>
      %42 = arith.subf %41, %38 : vector<1x32xf32>
      %43 = arith.mulf %42, %42 : vector<1x32xf32>
      %44 = vector.shape_cast %43 : vector<1x32xf32> to vector<1x1x32xf32>
      %cst_23 = arith.constant dense<0.000000e+00> : vector<1xf32>
      %45 = vector.multi_reduction <add>, %44, %cst_23 [1, 2] : vector<1x1x32xf32> to vector<1xf32>
      %46 = vector.shape_cast %45 : vector<1xf32> to vector<1x1x1xf32>
      %47 = vector.extract %46[0, 0, 0] : f32 from vector<1x1x1xf32>
      %48 = arith.mulf %38, %38 : vector<1x32xf32>
      %49 = vector.shape_cast %48 : vector<1x32xf32> to vector<1x1x32xf32>
      %cst_24 = arith.constant dense<0.000000e+00> : vector<1xf32>
      %50 = vector.multi_reduction <add>, %49, %cst_24 [1, 2] : vector<1x1x32xf32> to vector<1xf32>
      %51 = vector.shape_cast %50 : vector<1xf32> to vector<1x1x1xf32>
      %52 = vector.extract %51[0, 0, 0] : f32 from vector<1x1x1xf32>
      %cst_25 = arith.constant 1.000000e-10 : f32
      %53 = arith.mulf %cst_25, %52 : f32
      %cst_26 = arith.constant 1.000000e-16 : f32
      %54 = arith.addf %53, %cst_26 : f32
      %c10_i32 = arith.constant 10 : i32
      %55 = arith.addi %arg5, %c10_i32 : i32
      scf.yield %55, %41, %47, %54 : i32, vector<1x32xf32>, f32, f32
    }
    %cst_10 = arith.constant dense<0.000000e+00> : vector<1x32xf32>
    %8 = tpu.matmul %7#1, %2, %cst_10 {dimension_numbers = #tpu.dot_dimension_numbers<[1], [0], [0], [1], [0, 0, 1, 1], [], []>} : vector<1x32xf32>, vector<32x32xf32>, vector<1x32xf32> -> vector<1x32xf32>
    %9 = arith.addf %5, %8 : vector<1x32xf32>
    %10 = math.tanh %9 : vector<1x32xf32>
    %c0_11 = arith.constant 0 : index
    %c0_12 = arith.constant 0 : index
    %11 = vector.load %arg4[%c0_11, %c0_12] : memref<1x32xf32, #tpu.memory_space<vmem>>, vector<1x32xf32>
    tpu.vector_store %arg4[%c0_11, %c0_12], %10 {strides = array<i32>} : memref<1x32xf32, #tpu.memory_space<vmem>>, vector<1x32xf32>,
    return
  }
}

</mosaic_0001>

<llo_original>
// kernel: deq_fixed_point.1
$region0: #{deq_fixed_point.1}
  #allocation0 [shape = 'u32[]', space=smem, size = 0x4, offset = 0x4, fixed_abs, tag = 'smem constant byte address 0x4 - core index']
  #allocation1 [shape = 'u32[72,128]{1,0:T(1,128)}', space=vmem, size = 0x9000, scoped, tag = 'internal scratch']
  %s0 = inlined_call_operand.hbm [shape: f32[1,32], index: 0, kind: input, shape index: {}]
  %s1 = inlined_call_operand.hbm [shape: f32[32,32], index: 1, kind: input, shape index: {}]
  %s2 = inlined_call_operand.hbm [shape: f32[32,32], index: 2, kind: input, shape index: {}]
  %s3 = inlined_call_operand.vmem [shape: f32[1,32], index: 3, kind: input, shape index: {}]
  %s4 = inlined_call_operand.hbm [shape: f32[1,32], index: 4, kind: output, shape index: {}]
  %s5 = sld [smem:[#allocation0]]
  $region45: #{deq_fixed_point.1} parent=0
    _
  %s7 = ssub.s32 1, %s5
  %s8 = scalar_select 0, %s7, %s5
  $region1: #{deq_fixed_point.1} parent=0
    #allocation2 [shape = 'u8[512]{0}', space=vmem, size = 0x400, scoped, tag = 'input window, operand 0, single buffered']
    #allocation3 [shape = 's32[1]{0}', space=sflag, size = 0x4, scoped, tag = 'scoped memory for deq_fixed_point.1']
    #allocation4 [shape = 's32[1]{0}', space=sflag, size = 0x4, scoped, tag = 'scoped memory for deq_fixed_point.1']
    #allocation5 [shape = 'u8[16384]{0}', space=vmem, size = 0x4000, scoped, tag = 'input window, operand 1, single buffered']
    #allocation6 [shape = 's32[1]{0}', space=sflag, size = 0x4, scoped, tag = 'scoped memory for deq_fixed_point.1']
    #allocation7 [shape = 'u8[16384]{0}', space=vmem, size = 0x4000, scoped, tag = 'input window, operand 2, single buffered']
    #allocation8 [shape = 'u8[512]{0}', space=vmem, size = 0x400, scoped, tag = 'output window, operand 0, single buffered']
    %9 = vsyncpa [#allocation3], 0
    %10 = vsyncpa [#allocation6], 0
    %11 = vsyncpa [#allocation4], 0
    // Predicated region
    $region2: #{deq_fixed_point.1} parent=1 // pred_check
      _
    $region3: #{deq_fixed_point.1} parent=1 // pred_check_branch
      %13 = sbr.rel (0) target = $region5
    $region4: #{deq_fixed_point.1} parent=1 // pred_region
      %15 = vsyncadd [#allocation3], 0
      %s17 = sshll.u32 %s0, 4
      %s18 = int_to_ptr.hbm [resolvable:$true] %s17
      %s19 = sshll.u32 [#allocation2], 4
      %s20 = int_to_ptr.vmem [resolvable:$true] %s19
      %22 = dma.hbm_to_vmem [thread:$0]  %s18, 16, %s20, [#allocation3]
    $region5: #{deq_fixed_point.1} parent=1 // pred_fallthru
      _
    // Predicated region
    $region6: #{deq_fixed_point.1} parent=1 // pred_check
      _
    $region7: #{deq_fixed_point.1} parent=1 // pred_check_branch
      %24 = sbr.rel (0) target = $region9
    $region8: #{deq_fixed_point.1} parent=1 // pred_region
      %26 = vsyncadd [#allocation6], 0
      %s27 = sshll.u32 %s1, 4
      %s28 = int_to_ptr.hbm [resolvable:$true] %s27
      %s29 = sshll.u32 [#allocation5], 4
      %s30 = int_to_ptr.vmem [resolvable:$true] %s29
      %35 = dma.hbm_to_vmem [thread:$0]  %s28, 512, %s30, [#allocation6], 128, 128, 8
    $region9: #{deq_fixed_point.1} parent=1 // pred_fallthru
      _
    // Predicated region
    $region10: #{deq_fixed_point.1} parent=1 // pred_check
      _
    $region11: #{deq_fixed_point.1} parent=1 // pred_check_branch
      %37 = sbr.rel (0) target = $region13
    $region12: #{deq_fixed_point.1} parent=1 // pred_region
      %39 = vsyncadd [#allocation6], 0
      %s40 = sshll.u32 %s2, 4
      %s41 = int_to_ptr.hbm [resolvable:$true] %s40
      %s42 = sshll.u32 [#allocation7], 4
      %s43 = int_to_ptr.vmem [resolvable:$true] %s42
      %48 = dma.hbm_to_vmem [thread:$0]  %s41, 512, %s43, [#allocation6], 128, 128, 8
    $region13: #{deq_fixed_point.1} parent=1 // pred_fallthru
      _
    // Predicated region
    $region14: #{deq_fixed_point.1} parent=1 // pred_check
      _
    $region15: #{deq_fixed_point.1} parent=1 // pred_check_branch
      %50 = sbr.rel (0) target = $region17
    $region16: #{deq_fixed_point.1} parent=1 // pred_region
      _
    $region17: #{deq_fixed_point.1} parent=1 // pred_fallthru
      _
    // Predicated region
    $region18: #{deq_fixed_point.1} parent=1 // pred_check
      _
    $region19: #{deq_fixed_point.1} parent=1 // pred_check_branch
      %52 = sbr.rel (0) target = $region21
    $region20: #{deq_fixed_point.1} parent=1 // pred_region
      %54 = dma.done [#allocation3], 16
    $region21: #{deq_fixed_point.1} parent=1 // pred_fallthru
      _
    // Predicated region
    $region22: #{deq_fixed_point.1} parent=1 // pred_check
      _
    $region23: #{deq_fixed_point.1} parent=1 // pred_check_branch
      %56 = sbr.rel (0) target = $region25
    $region24: #{deq_fixed_point.1} parent=1 // pred_region
      %58 = dma.done [#allocation6], 512
    $region25: #{deq_fixed_point.1} parent=1 // pred_fallthru
      _
    // Predicated region
    $region26: #{deq_fixed_point.1} parent=1 // pred_check
      _
    $region27: #{deq_fixed_point.1} parent=1 // pred_check_branch
      %60 = sbr.rel (0) target = $region29
    $region28: #{deq_fixed_point.1} parent=1 // pred_region
      %62 = dma.done [#allocation6], 512
    $region29: #{deq_fixed_point.1} parent=1 // pred_fallthru
      _
    %v63 = vld [vmem:[#allocation2] sm:$0x1]
    %v64 = vld [vmem:[#allocation5] sm:$0xff]
    %v65 = vld [vmem:[#allocation5 + $0x8] sm:$0xff]
    %v66 = vld [vmem:[#allocation5 + $0x10] sm:$0xff]
    %v67 = vld [vmem:[#allocation5 + $0x18] sm:$0xff]
    %v68 = vld [vmem:[#allocation7] sm:$0xff]
    %v69 = vld [vmem:[#allocation7 + $0x8] sm:$0xff]
    %v70 = vld [vmem:[#allocation7 + $0x10] sm:$0xff]
    %v71 = vld [vmem:[#allocation7 + $0x18] sm:$0xff]
    %v72 = vld [vmem:[%s3] sm:$0x1]
    %vm73 = vcmask 261120
    %v75 = vsel %vm73, %v63, 0
    %77 = vmatpush.msra.mxu0 0.0
    %78 = vmatpush.msra.mxu0 0.0
    %79 = vmatpush.msra.mxu0 0.0
    %80 = vmatpush.msra.mxu0 0.0
    %81 = vmatpush.msra.mxu0 0.0
    %82 = vmatpush.msra.mxu0 0.0
    %83 = vmatpush.msra.mxu0 0.0
    %84 = vmatpush.msra.mxu0 0.0
    %85 = vmatpush.msra.mxu0 0.0
    %86 = vmatpush.msra.mxu0 0.0
    %87 = vmatpush.msra.mxu0 0.0
    %88 = vmatpush.msra.mxu0 0.0
    %89 = vmatpush.msra.mxu0 %v67
    %90 = vmatpush.msra.mxu0 %v66
    %91 = vmatpush.msra.mxu0 %v65
    %92 = vmatpush.msra.mxu0 %v64
    %93 = vmatmul.f32.gmra.mxu0 %v75
    %v94 = vpop.f32.mrf.mxu0
    %v95 = vadd.f32 %v72, %v94
    %96 = vdwg.mxu0
    // While loop
    $region30: #{deq_fixed_point.1} parent=1 // loop_pre_header
      _
    $region31: #{deq_fixed_point.1} parent=1 // loop_header
      %s98 = sphi 0, %s384
      %v99 = vphi 0.0, %v357
      %s100 = sphi 1.0, %s370
      %s101 = sphi 0.0, %s383
      %p102 = scmp.gt.f32.partialorder %s100, %s101
      %p103 = scmp.lt.s32.totalorder %s98, 100
      %p104 = pnand %p102, %p103
      %p105 = pneg %p104
    $region32: #{deq_fixed_point.1} parent=1 // loop_header_branch
      %107 = sbr.rel (%p104) target = $region36
    $region33: #{deq_fixed_point.1} parent=1 // loop_body
      %v109 = vsel %vm73, %v99, 0
      %111 = vmatpush.msra.mxu0 0.0
      %112 = vmatpush.msra.mxu0 0.0
      %113 = vmatpush.msra.mxu0 0.0
      %114 = vmatpush.msra.mxu0 0.0
      %115 = vmatpush.msra.mxu0 0.0
      %116 = vmatpush.msra.mxu0 0.0
      %117 = vmatpush.msra.mxu0 0.0
      %118 = vmatpush.msra.mxu0 0.0
      %119 = vmatpush.msra.mxu0 0.0
      %120 = vmatpush.msra.mxu0 0.0
      %121 = vmatpush.msra.mxu0 0.0
      %122 = vmatpush.msra.mxu0 0.0
      %123 = vmatpush.msra.mxu0 %v71
      %124 = vmatpush.msra.mxu0 %v70
      %125 = vmatpush.msra.mxu0 %v69
      %126 = vmatpush.msra.mxu0 %v68
      %127 = vmatmul.f32.gmra.mxu0 %v109
      %v128 = vpop.f32.mrf.mxu0
      %v129 = vadd.f32 0.0, %v128
      %130 = vdwg.mxu0
      %v131 = vadd.f32 %v95, %v129
      %v132 = vtanh.pop %v131
      %v134 = vsel %vm73, %v132, 0
      %136 = vmatpush.msra.mxu0 0.0
      %137 = vmatpush.msra.mxu0 0.0
      %138 = vmatpush.msra.mxu0 0.0
      %139 = vmatpush.msra.mxu0 0.0
      %140 = vmatpush.msra.mxu0 0.0
      %141 = vmatpush.msra.mxu0 0.0
      %142 = vmatpush.msra.mxu0 0.0
      %143 = vmatpush.msra.mxu0 0.0
      %144 = vmatpush.msra.mxu0 0.0
      %145 = vmatpush.msra.mxu0 0.0
      %146 = vmatpush.msra.mxu0 0.0
      %147 = vmatpush.msra.mxu0 0.0
      %148 = vmatpush.msra.mxu0 %v71
      %149 = vmatpush.msra.mxu0 %v70
      %150 = vmatpush.msra.mxu0 %v69
      %151 = vmatpush.msra.mxu0 %v68
      %152 = vmatmul.f32.gmra.mxu0 %v134
      %v153 = vpop.f32.mrf.mxu0
      %v154 = vadd.f32 0.0, %v153
      %155 = vdwg.mxu0
      %v156 = vadd.f32 %v95, %v154
      %v157 = vtanh.pop %v156
      %v159 = vsel %vm73, %v157, 0
      %161 = vmatpush.msra.mxu0 0.0
      %162 = vmatpush.msra.mxu0 0.0
      %163 = vmatpush.msra.mxu0 0.0
      %164 = vmatpush.msra.mxu0 0.0
      %165 = vmatpush.msra.mxu0 0.0
      %166 = vmatpush.msra.mxu0 0.0
      %167 = vmatpush.msra.mxu0 0.0
      %168 = vmatpush.msra.mxu0 0.0
      %169 = vmatpush.msra.mxu0 0.0
      %170 = vmatpush.msra.mxu0 0.0
      %171 = vmatpush.msra.mxu0 0.0
      %172 = vmatpush.msra.mxu0 0.0
      %173 = vmatpush.msra.mxu0 %v71
      %174 = vmatpush.msra.mxu0 %v70
      %175 = vmatpush.msra.mxu0 %v69
      %176 = vmatpush.msra.mxu0 %v68
      %177 = vmatmul.f32.gmra.mxu0 %v159
      %v178 = vpop.f32.mrf.mxu0
      %v179 = vadd.f32 0.0, %v178
      %180 = vdwg.mxu0
      %v181 = vadd.f32 %v95, %v179
      %v182 = vtanh.pop %v181
      %v184 = vsel %vm73, %v182, 0
      %186 = vmatpush.msra.mxu0 0.0
      %187 = vmatpush.msra.mxu0 0.0
      %188 = vmatpush.msra.mxu0 0.0
      %189 = vmatpush.msra.mxu0 0.0
      %190 = vmatpush.msra.mxu0 0.0
      %191 = vmatpush.msra.mxu0 0.0
      %192 = vmatpush.msra.mxu0 0.0
      %193 = vmatpush.msra.mxu0 0.0
      %194 = vmatpush.msra.mxu0 0.0
      %195 = vmatpush.msra.mxu0 0.0
      %196 = vmatpush.msra.mxu0 0.0
      %197 = vmatpush.msra.mxu0 0.0
      %198 = vmatpush.msra.mxu0 %v71
      %199 = vmatpush.msra.mxu0 %v70
      %200 = vmatpush.msra.mxu0 %v69
      %201 = vmatpush.msra.mxu0 %v68
      %202 = vmatmul.f32.gmra.mxu0 %v184
      %v203 = vpop.f32.mrf.mxu0
      %v204 = vadd.f32 0.0, %v203
      %205 = vdwg.mxu0
      %v206 = vadd.f32 %v95, %v204
      %v207 = vtanh.pop %v206
      %v209 = vsel %vm73, %v207, 0
      %211 = vmatpush.msra.mxu0 0.0
      %212 = vmatpush.msra.mxu0 0.0
      %213 = vmatpush.msra.mxu0 0.0
      %214 = vmatpush.msra.mxu0 0.0
      %215 = vmatpush.msra.mxu0 0.0
      %216 = vmatpush.msra.mxu0 0.0
      %217 = vmatpush.msra.mxu0 0.0
      %218 = vmatpush.msra.mxu0 0.0
      %219 = vmatpush.msra.mxu0 0.0
      %220 = vmatpush.msra.mxu0 0.0
      %221 = vmatpush.msra.mxu0 0.0
      %222 = vmatpush.msra.mxu0 0.0
      %223 = vmatpush.msra.mxu0 %v71
      %224 = vmatpush.msra.mxu0 %v70
      %225 = vmatpush.msra.mxu0 %v69
      %226 = vmatpush.msra.mxu0 %v68
      %227 = vmatmul.f32.gmra.mxu0 %v209
      %v228 = vpop.f32.mrf.mxu0
      %v229 = vadd.f32 0.0, %v228
      %230 = vdwg.mxu0
      %v231 = vadd.f32 %v95, %v229
      %v232 = vtanh.pop %v231
      %v234 = vsel %vm73, %v232, 0
      %236 = vmatpush.msra.mxu0 0.0
      %237 = vmatpush.msra.mxu0 0.0
      %238 = vmatpush.msra.mxu0 0.0
      %239 = vmatpush.msra.mxu0 0.0
      %240 = vmatpush.msra.mxu0 0.0
      %241 = vmatpush.msra.mxu0 0.0
      %242 = vmatpush.msra.mxu0 0.0
      %243 = vmatpush.msra.mxu0 0.0
      %244 = vmatpush.msra.mxu0 0.0
      %245 = vmatpush.msra.mxu0 0.0
      %246 = vmatpush.msra.mxu0 0.0
      %247 = vmatpush.msra.mxu0 0.0
      %248 = vmatpush.msra.mxu0 %v71
      %249 = vmatpush.msra.mxu0 %v70
      %250 = vmatpush.msra.mxu0 %v69
      %251 = vmatpush.msra.mxu0 %v68
      %252 = vmatmul.f32.gmra.mxu0 %v234
      %v253 = vpop.f32.mrf.mxu0
      %v254 = vadd.f32 0.0, %v253
      %255 = vdwg.mxu0
      %v256 = vadd.f32 %v95, %v254
      %v257 = vtanh.pop %v256
      %v259 = vsel %vm73, %v257, 0
      %261 = vmatpush.msra.mxu0 0.0
      %262 = vmatpush.msra.mxu0 0.0
      %263 = vmatpush.msra.mxu0 0.0
      %264 = vmatpush.msra.mxu0 0.0
      %265 = vmatpush.msra.mxu0 0.0
      %266 = vmatpush.msra.mxu0 0.0
      %267 = vmatpush.msra.mxu0 0.0
      %268 = vmatpush.msra.mxu0 0.0
      %269 = vmatpush.msra.mxu0 0.0
      %270 = vmatpush.msra.mxu0 0.0
      %271 = vmatpush.msra.mxu0 0.0
      %272 = vmatpush.msra.mxu0 0.0
      %273 = vmatpush.msra.mxu0 %v71
      %274 = vmatpush.msra.mxu0 %v70
      %275 = vmatpush.msra.mxu0 %v69
      %276 = vmatpush.msra.mxu0 %v68
      %277 = vmatmul.f32.gmra.mxu0 %v259
      %v278 = vpop.f32.mrf.mxu0
      %v279 = vadd.f32 0.0, %v278
      %280 = vdwg.mxu0
      %v281 = vadd.f32 %v95, %v279
      %v282 = vtanh.pop %v281
      %v284 = vsel %vm73, %v282, 0
      %286 = vmatpush.msra.mxu0 0.0
      %287 = vmatpush.msra.mxu0 0.0
      %288 = vmatpush.msra.mxu0 0.0
      %289 = vmatpush.msra.mxu0 0.0
      %290 = vmatpush.msra.mxu0 0.0
      %291 = vmatpush.msra.mxu0 0.0
      %292 = vmatpush.msra.mxu0 0.0
      %293 = vmatpush.msra.mxu0 0.0
      %294 = vmatpush.msra.mxu0 0.0
      %295 = vmatpush.msra.mxu0 0.0
      %296 = vmatpush.msra.mxu0 0.0
      %297 = vmatpush.msra.mxu0 0.0
      %298 = vmatpush.msra.mxu0 %v71
      %299 = vmatpush.msra.mxu0 %v70
      %300 = vmatpush.msra.mxu0 %v69
      %301 = vmatpush.msra.mxu0 %v68
      %302 = vmatmul.f32.gmra.mxu0 %v284
      %v303 = vpop.f32.mrf.mxu0
      %v304 = vadd.f32 0.0, %v303
      %305 = vdwg.mxu0
      %v306 = vadd.f32 %v95, %v304
      %v307 = vtanh.pop %v306
      %v309 = vsel %vm73, %v307, 0
      %311 = vmatpush.msra.mxu0 0.0
      %312 = vmatpush.msra.mxu0 0.0
      %313 = vmatpush.msra.mxu0 0.0
      %314 = vmatpush.msra.mxu0 0.0
      %315 = vmatpush.msra.mxu0 0.0
      %316 = vmatpush.msra.mxu0 0.0
      %317 = vmatpush.msra.mxu0 0.0
      %318 = vmatpush.msra.mxu0 0.0
      %319 = vmatpush.msra.mxu0 0.0
      %320 = vmatpush.msra.mxu0 0.0
      %321 = vmatpush.msra.mxu0 0.0
      %322 = vmatpush.msra.mxu0 0.0
      %323 = vmatpush.msra.mxu0 %v71
      %324 = vmatpush.msra.mxu0 %v70
      %325 = vmatpush.msra.mxu0 %v69
      %326 = vmatpush.msra.mxu0 %v68
      %327 = vmatmul.f32.gmra.mxu0 %v309
      %v328 = vpop.f32.mrf.mxu0
      %v329 = vadd.f32 0.0, %v328
      %330 = vdwg.mxu0
      %v331 = vadd.f32 %v95, %v329
      %v332 = vtanh.pop %v331
      %v334 = vsel %vm73, %v332, 0
      %336 = vmatpush.msra.mxu0 0.0
      %337 = vmatpush.msra.mxu0 0.0
      %338 = vmatpush.msra.mxu0 0.0
      %339 = vmatpush.msra.mxu0 0.0
      %340 = vmatpush.msra.mxu0 0.0
      %341 = vmatpush.msra.mxu0 0.0
      %342 = vmatpush.msra.mxu0 0.0
      %343 = vmatpush.msra.mxu0 0.0
      %344 = vmatpush.msra.mxu0 0.0
      %345 = vmatpush.msra.mxu0 0.0
      %346 = vmatpush.msra.mxu0 0.0
      %347 = vmatpush.msra.mxu0 0.0
      %348 = vmatpush.msra.mxu0 %v71
      %349 = vmatpush.msra.mxu0 %v70
      %350 = vmatpush.msra.mxu0 %v69
      %351 = vmatpush.msra.mxu0 %v68
      %352 = vmatmul.f32.gmra.mxu0 %v334
      %v353 = vpop.f32.mrf.mxu0
      %v354 = vadd.f32 0.0, %v353
      %355 = vdwg.mxu0
      %v356 = vadd.f32 %v95, %v354
      %v357 = vtanh.pop %v356
      %v358 = vsub.f32 %v357, %v332
      %v359 = vmul.f32 %v358, %v358
      %vm360 = vcmask 253952
      %v361 = vsel %vm360, %v359, 0.0
      %362 = vadd.xlane.f32.xlu0 %v361
      %v363 = vpop.xlane.xlu0 %362
      %v364 = vrot.slane %v363, 4
      %v365 = vadd.f32 %v363, %v364
      %v366 = vrot.slane %v365, 2
      %v367 = vadd.f32 %v365, %v366
      %v368 = vrot.slane %v367, 1
      %v369 = vadd.f32 %v367, %v368
      %s370 = vtos %v369
      %v371 = vmul.f32 %v332, %v332
      %v372 = vsel %vm360, %v371, 0.0
      %373 = vadd.xlane.f32.xlu0 %v372
      %v374 = vpop.xlane.xlu0 %373
      %v375 = vrot.slane %v374, 4
      %v376 = vadd.f32 %v374, %v375
      %v377 = vrot.slane %v376, 2
      %v378 = vadd.f32 %v376, %v377
      %v379 = vrot.slane %v378, 1
      %v380 = vadd.f32 %v378, %v379
      %s381 = vtos %v380
      %s382 = smul.f32 %s381, 1e-10
      %s383 = sadd.f32 %s382, 1e-16
      %s384 = sadd.s32 %s98, 10
    $region34: #{deq_fixed_point.1} parent=1 // loop_footer
      _
    $region35: #{deq_fixed_point.1} parent=1 // loop_footer_branch
      %97 = sbr.rel target = $region31
    $region36: #{deq_fixed_point.1} parent=1 // loop_exit
      _
    %v386 = vsel %vm73, %v99, 0
    %388 = vmatpush.msra.mxu0 0.0
    %389 = vmatpush.msra.mxu0 0.0
    %390 = vmatpush.msra.mxu0 0.0
    %391 = vmatpush.msra.mxu0 0.0
    %392 = vmatpush.msra.mxu0 0.0
    %393 = vmatpush.msra.mxu0 0.0
    %394 = vmatpush.msra.mxu0 0.0
    %395 = vmatpush.msra.mxu0 0.0
    %396 = vmatpush.msra.mxu0 0.0
    %397 = vmatpush.msra.mxu0 0.0
    %398 = vmatpush.msra.mxu0 0.0
    %399 = vmatpush.msra.mxu0 0.0
    %400 = vmatpush.msra.mxu0 %v71
    %401 = vmatpush.msra.mxu0 %v70
    %402 = vmatpush.msra.mxu0 %v69
    %403 = vmatpush.msra.mxu0 %v68
    %404 = vmatmul.f32.gmra.mxu0 %v386
    %v405 = vpop.f32.mrf.mxu0
    %v406 = vadd.f32 0.0, %v405
    %407 = vdwg.mxu0
    %v408 = vadd.f32 %v95, %v406
    %v409 = vtanh.pop %v408
    %vm410 = vcmask 253952
    %411 = vst.msk [vmem:[#allocation8] sm:$0x1] %vm410, %v409
    // Predicated region
    $region37: #{deq_fixed_point.1} parent=1 // pred_check
      _
    $region38: #{deq_fixed_point.1} parent=1 // pred_check_branch
      %413 = sbr.rel (0) target = $region40
    $region39: #{deq_fixed_point.1} parent=1 // pred_region
      %415 = vsyncadd [#allocation4], 0
      %s417 = sshll.u32 [#allocation8], 4
      %s418 = int_to_ptr.vmem [resolvable:$true] %s417
      %s419 = sshll.u32 %s4, 4
      %s420 = int_to_ptr.hbm [resolvable:$true] %s419
      %422 = dma.vmem_to_hbm [thread:$0]  %s418, 16, %s420, [#allocation4]
    $region40: #{deq_fixed_point.1} parent=1 // pred_fallthru
      _
    // Predicated region
    $region41: #{deq_fixed_point.1} parent=1 // pred_check
      _
    $region42: #{deq_fixed_point.1} parent=1 // pred_check_branch
      %424 = sbr.rel (0) target = $region44
    $region43: #{deq_fixed_point.1} parent=1 // pred_region
      %426 = dma.done [#allocation4], 16
    $region44: #{deq_fixed_point.1} parent=1 // pred_fallthru
      _
    %427 = vsyncpa [#allocation3], 1
    %428 = vsyncpa [#allocation6], 1
    %429 = vsyncpa [#allocation4], 1

</llo_original>
